<compile_context>
chip_gen: v7x
topology: tpu7x:2x2x1
jax: 0.10.0
libtpu: 0.0.40
codegen_flags: <defaults>
</compile_context>

<pallas_src>
import math

import jax
import jax.numpy as jnp
from jax.experimental import pallas as pl
from jax.experimental.pallas import tpu as pltpu


_WEIGHT_VMEM_CAP = 2 << 20   # per-buffer cap on the block-diagonal weight


def _round_up(x, m):
    return ((x + m - 1) // m) * m


def _cdiv(a, b):
    return (a + b - 1) // b


def _tpu_generation():
    try:
        kind = jax.devices()[0].device_kind.lower()
    except Exception:
        return "unknown"
    if "v5 lite" in kind or "v5e" in kind or "v5lite" in kind:
        return "v5e"
    if "v6" in kind:
        return "v6e"
    if "7x" in kind or "tpu7" in kind or "v7" in kind:
        return "v7x"
    if "v5" in kind:
        return "v5p"
    return "unknown"


def _generation_config(gen, itemsize):
    """-> (target input-tile bytes, vmem_limit_bytes, out-lane target, num TCs)."""
    if gen == "v7x":
        # 64 MiB VMEM/TC, 3.2 TB/s HBM, 2 TensorCores per chip.
        return (8 << 20, 48 << 20, 128, 2)
    if gen == "v5e":
        # 128 MiB VMEM; weaker f32 MXU -> cap packing at 64 lanes for f32.
        return (12 << 20, 64 << 20, 64 if itemsize >= 4 else 128, 1)
    if gen in ("v6e", "v5p"):
        return (12 << 20, 64 << 20, 128, 1)
    return (8 << 20, 48 << 20, 128, 1)


def _linear_kernel(x_ref, w_ref, b_ref, o_ref):
    # x_ref: (block_rows, P*D), w_ref: (P*D, P), b_ref: (1, P), o_ref: (block_rows, P)
    acc = jnp.dot(x_ref[...], w_ref[...], preferred_element_type=jnp.float32)
    o_ref[...] = (acc + b_ref[...]).astype(o_ref.dtype)


@jax.jit
def node_feature_to_scalar(x, weight, bias):
    """y = x @ weight.T + bias, weight: (1, D), bias: (1,).

    x may have arbitrary leading dims; last dim must equal D.
    Returns x.shape[:-1] + (1,), matching torch.nn.Linear(D, 1).
    """
    *lead, d = x.shape
    x2d = x.reshape(-1, d)
    n = x2d.shape[0]
    out_dtype = x.dtype
    itemsize = jnp.dtype(x.dtype).itemsize

    gen = _tpu_generation()
    target_tile_bytes, vmem_limit, p_target, num_cores = _generation_config(gen, itemsize)

    w_col = weight.reshape(d, 1).astype(x.dtype)
    b_f32 = bias.reshape(1, 1).astype(jnp.float32)

    # ---- packing factor P: pack P rows into one lane-aligned super-row ------
    base = 128 // math.gcd(d, 128)                    # smallest lane-aligned group
    m_fit = n // base                                 # groups that actually exist
    if m_fit > 0:
        m_lane = max(1, p_target // base)             # aim for 64-128 output lanes
        m_wcap = max(1, int(math.isqrt(_WEIGHT_VMEM_CAP // max(1, d * itemsize))) // base)
        m = max(1, min(m_lane, m_fit, m_wcap))
        p = base * m                                  # rows packed per super-row
        n_main = (n // p) * p
    else:
        p = 0
        n_main = 0

    parts = []
    if n_main > 0:
        np_rows = n_main // p
        dp = p * d                                    # multiple of 128 lanes (no pad)
        xp = x2d[:n_main].reshape(np_rows, dp)        # metadata-only reshape
        # Block-diagonal (P*D, P) weight: column j applies w to packed row j.
        wp = jnp.kron(jnp.eye(p, dtype=w_col.dtype), w_col)
        bp = jnp.tile(b_f32, (1, p))                  # (1, P) f32

        # ---- row-tile size: stream the biggest tile the VMEM budget allows --
        granule = 8 * max(1, 4 // itemsize)           # sublane granule per dtype
        bytes_per_srow = dp * itemsize
        rows_fit = max(granule, target_tile_bytes // bytes_per_srow)
        block_rows = max(granule, (rows_fit // granule) * granule)
        block_rows = min(block_rows, _round_up(np_rows, granule))
        if num_cores > 1:
            # v7x: keep >= 2 grid steps so the "parallel" axis shards over 2 TCs.
            block_rows = min(block_rows,
                             max(granule, _round_up(_cdiv(np_rows, num_cores), granule)))

        grid = (_cdiv(np_rows, block_rows),)          # ragged last block is fine

        cost = pl.CostEstimate(
            flops=2 * np_rows * dp * p,               # true packed MXU work (2*N*D*P)
            transcendentals=0,
            bytes_accessed=(n_main * d * itemsize                 # x stream
                            + n_main * jnp.dtype(out_dtype).itemsize
                            + dp * p * itemsize                   # block-diag weight
                            + p * 4),                             # bias
        )

        out = pl.pallas_call(
            _linear_kernel,
            out_shape=jax.ShapeDtypeStruct((np_rows, p), out_dtype),
            grid_spec=pltpu.PrefetchScalarGridSpec(
                num_scalar_prefetch=0,
                grid=grid,
                in_specs=[
                    # TODO(synk): sweep pipeline_mode=pl.Buffered(3) on this spec
                    # on v7x; low single-digit % at best, so left at default 2.
                    pl.BlockSpec((block_rows, dp), lambda i: (i, 0)),
                    pl.BlockSpec((dp, p), lambda i: (0, 0)),
                    pl.BlockSpec((1, p), lambda i: (0, 0)),
                ],
                out_specs=pl.BlockSpec((block_rows, p), lambda i: (i, 0)),
            ),
            compiler_params=pltpu.CompilerParams(
                dimension_semantics=("parallel",),
                vmem_limit_bytes=vmem_limit,
            ),
            cost_estimate=cost,
        )(xp, wp, bp)

        # (N/P, P) flattens row-major back to the original row order.
        parts.append(out.reshape(n_main, 1))

    if n_main < n:
        # < P leftover rows: finish with a tiny plain-JAX dot instead of
        # demoting the whole call to a 1-lane-output kernel path.
        x_tail = x2d[n_main:]
        y_tail = (jnp.dot(x_tail, w_col, preferred_element_type=jnp.float32)
                  + b_f32).astype(out_dtype)
        parts.append(y_tail)

    y2d = parts[0] if len(parts) == 1 else jnp.concatenate(parts, axis=0)
    return y2d.reshape(*lead, 1)


if __name__ == "__main__":
    key = jax.random.PRNGKey(0)
    k_x, k_w, k_b, k_x2, k_x3 = jax.random.split(key, 5)

    input_dim = 32
    # torch.nn.Linear(input_dim, 1): weight (1, input_dim), bias (1,)
    bound = 1.0 / (input_dim ** 0.5)
    weight = jax.random.uniform(k_w, (1, input_dim), jnp.float32, -bound, bound)
    bias = jax.random.uniform(k_b, (1,), jnp.float32, -bound, bound)

    # Case 1: small node-feature batch, N divisible by the packing factor.
    x = jax.random.normal(k_x, (2, 8, input_dim), dtype=jnp.float32)
    y = jax.block_until_ready(node_feature_to_scalar(x, weight, bias))
    y_ref = x @ weight.T + bias
    assert y.shape == (2, 8, 1), y.shape
    assert jnp.allclose(y, y_ref, atol=1e-5, rtol=1e-5)

    # Case 2: ragged N -> packed kernel for floor(N/P)*P rows + tiny JAX tail
    # (no demotion to a 1-lane output path).
    x2 = jax.random.normal(k_x2, (5, 7, input_dim), dtype=jnp.float32)
    y2 = jax.block_until_ready(node_feature_to_scalar(x2, weight, bias))
    y2_ref = x2 @ weight.T + bias
    assert y2.shape == (5, 7, 1), y2.shape
    assert jnp.allclose(y2, y2_ref, atol=1e-5, rtol=1e-5)

    # Case 3: D a multiple of 128 now also gets a lane-dense (packed) output.
    input_dim3 = 128
    bound3 = 1.0 / (input_dim3 ** 0.5)
    w3 = jax.random.uniform(k_w, (1, input_dim3), jnp.float32, -bound3, bound3)
    b3 = jax.random.uniform(k_b, (1,), jnp.float32, -bound3, bound3)
    x3 = jax.random.normal(k_x3, (3, 40, input_dim3), dtype=jnp.float32)
    y3 = jax.block_until_ready(node_feature_to_scalar(x3, w3, b3))
    y3_ref = x3 @ w3.T + b3
    assert y3.shape == (3, 40, 1), y3.shape
    assert jnp.allclose(y3, y3_ref, atol=1e-4, rtol=1e-4)

    print("KERNEL_OK")
</pallas_src>

<mosaic_0001>
module attributes {stable_mosaic.version = 11 : i64} {
  func.func @_linear_kernel(%arg0: i32, %arg1: memref<8x512xf32, #tpu.memory_space<vmem>>, %arg2: memref<512x16xf32, #tpu.memory_space<vmem>>, %arg3: memref<1x16xf32, #tpu.memory_space<vmem>>, %arg4: memref<8x16xf32, #tpu.memory_space<vmem>>) attributes {dimension_semantics = [#tpu.dimension_semantics<parallel>], iteration_bounds = array<i64: 1>, scalar_prefetch = 0 : i64, scratch_operands = 0 : i64, tpu.core_type = #tpu.core_type<tc>, window_params = [{transform_indices = @transform_0, window_bounds = array<i64: 8, 512>}, {pipeline_mode = #tpu.pipeline_mode<synchronous>, transform_indices = @transform_1, window_bounds = array<i64: 512, 16>}, {pipeline_mode = #tpu.pipeline_mode<synchronous>, transform_indices = @transform_2, window_bounds = array<i64: 1, 16>}, {transform_indices = @transform_3, window_bounds = array<i64: 8, 16>}]} {
    %c0 = arith.constant 0 : index
    %c0_0 = arith.constant 0 : index
    %0 = vector.load %arg1[%c0, %c0_0] : memref<8x512xf32, #tpu.memory_space<vmem>>, vector<8x512xf32>
    %c0_1 = arith.constant 0 : index
    %c0_2 = arith.constant 0 : index
    %1 = vector.load %arg2[%c0_1, %c0_2] : memref<512x16xf32, #tpu.memory_space<vmem>>, vector<512x16xf32>
    %cst = arith.constant dense<0.000000e+00> : vector<8x16xf32>
    %2 = tpu.matmul %0, %1, %cst {dimension_numbers = #tpu.dot_dimension_numbers<[1], [0], [0], [1], [0, 0, 1, 1], [], []>} : vector<8x512xf32>, vector<512x16xf32>, vector<8x16xf32> -> vector<8x16xf32>
    %c0_3 = arith.constant 0 : index
    %c0_4 = arith.constant 0 : index
    %3 = vector.load %arg3[%c0_3, %c0_4] : memref<1x16xf32, #tpu.memory_space<vmem>>, vector<1x16xf32>
    %4 = vector.broadcast %3 : vector<1x16xf32> to vector<8x16xf32>
    %5 = arith.addf %2, %4 : vector<8x16xf32>
    %c0_5 = arith.constant 0 : index
    %c0_6 = arith.constant 0 : index
    %6 = vector.load %arg4[%c0_5, %c0_6] : memref<8x16xf32, #tpu.memory_space<vmem>>, vector<8x16xf32>
    tpu.vector_store %arg4[%c0_5, %c0_6], %5 {strides = array<i32>} : memref<8x16xf32, #tpu.memory_space<vmem>>, vector<8x16xf32>,
    return
  }
  func.func @transform_0(%arg0: i32) -> (i32, i32) {
    %c0_i32 = arith.constant 0 : i32
    %c0_i32_0 = arith.constant 0 : i32
    return %arg0, %c0_i32 : i32, i32
  }
  func.func @transform_1(%arg0: i32) -> (i32, i32) {
    %c0_i32 = arith.constant 0 : i32
    %c0_i32_0 = arith.constant 0 : i32
    %c0_i32_1 = arith.constant 0 : i32
    return %c0_i32, %c0_i32_0 : i32, i32
  }
  func.func @transform_2(%arg0: i32) -> (i32, i32) {
    %c0_i32 = arith.constant 0 : i32
    %c0_i32_0 = arith.constant 0 : i32
    %c0_i32_1 = arith.constant 0 : i32
    return %c0_i32, %c0_i32_0 : i32, i32
  }
  func.func @transform_3(%arg0: i32) -> (i32, i32) {
    %c0_i32 = arith.constant 0 : i32
    %c0_i32_0 = arith.constant 0 : i32
    return %arg0, %c0_i32 : i32, i32
  }
}

</mosaic_0001>

<llo_original>
// kernel: node_feature_to_scalar.1
$region0: #{node_feature_to_scalar.1}
  #allocation0 [shape = 'u32[]', space=smem, size = 0x4, offset = 0x4, fixed_abs, tag = 'smem constant byte address 0x4 - core index']
  #allocation1 [shape = 'u32[144,128]{1,0:T(1,128)}', space=vmem, size = 0x12000, scoped, tag = 'internal scratch']
  %s0 = inlined_call_operand.vmem [shape: f32[1,512], index: 0, kind: input, shape index: {}]
  %s1 = inlined_call_operand.vmem [shape: f32[512,16], index: 1, kind: input, shape index: {}]
  %s2 = inlined_call_operand.vmem [shape: f32[1,16], index: 2, kind: input, shape index: {}]
  %s3 = inlined_call_operand.vmem [shape: f32[1,16], index: 3, kind: output, shape index: {}]
  %s4 = sld [smem:[#allocation0]]
  $region52: #{node_feature_to_scalar.1} parent=0
    _
  %s6 = ssub.s32 1, %s4
  %s7 = scalar_select 0, %s6, %s4
  $region1: #{node_feature_to_scalar.1} parent=0
    #allocation2 [shape = 'u8[4096]{0}', space=vmem, size = 0x1000, scoped, tag = 'output window, operand 0, single buffered']
    // Predicated region
    $region2: #{node_feature_to_scalar.1} parent=1 // pred_check
      _
    $region3: #{node_feature_to_scalar.1} parent=1 // pred_check_branch
      %9 = sbr.rel (0) target = $region5
    $region4: #{node_feature_to_scalar.1} parent=1 // pred_region
      _
    $region5: #{node_feature_to_scalar.1} parent=1 // pred_fallthru
      _
    // Predicated region
    $region6: #{node_feature_to_scalar.1} parent=1 // pred_check
      _
    $region7: #{node_feature_to_scalar.1} parent=1 // pred_check_branch
      %11 = sbr.rel (0) target = $region9
    $region8: #{node_feature_to_scalar.1} parent=1 // pred_region
      _
    $region9: #{node_feature_to_scalar.1} parent=1 // pred_fallthru
      _
    // Predicated region
    $region10: #{node_feature_to_scalar.1} parent=1 // pred_check
      _
    $region11: #{node_feature_to_scalar.1} parent=1 // pred_check_branch
      %13 = sbr.rel (0) target = $region13
    $region12: #{node_feature_to_scalar.1} parent=1 // pred_region
      _
    $region13: #{node_feature_to_scalar.1} parent=1 // pred_fallthru
      _
    %v14 = vld [vmem:[%s0] sm:$0xf]
    %v15 = vld [vmem:[%s0 + $0x4] sm:$0xf]
    %v16 = vld [vmem:[%s0 + $0x8] sm:$0xf]
    %v17 = vld [vmem:[%s0 + $0xc] sm:$0xf]
    %v18 = vld [vmem:[%s0 + $0x10] sm:$0xf]
    %v19 = vld [vmem:[%s0 + $0x14] sm:$0xf]
    %v20 = vld [vmem:[%s0 + $0x18] sm:$0xf]
    %v21 = vld [vmem:[%s0 + $0x1c] sm:$0xf]
    %v22 = vld [vmem:[%s1] sm:$0xff]
    %v23 = vld [vmem:[%s1 + $0x8] sm:$0xff]
    %v24 = vld [vmem:[%s1 + $0x10] sm:$0xff]
    %v25 = vld [vmem:[%s1 + $0x18] sm:$0xff]
    %v26 = vld [vmem:[%s1 + $0x20] sm:$0xff]
    %v27 = vld [vmem:[%s1 + $0x28] sm:$0xff]
    %v28 = vld [vmem:[%s1 + $0x30] sm:$0xff]
    %v29 = vld [vmem:[%s1 + $0x38] sm:$0xff]
    %v30 = vld [vmem:[%s1 + $0x40] sm:$0xff]
    %v31 = vld [vmem:[%s1 + $0x48] sm:$0xff]
    %v32 = vld [vmem:[%s1 + $0x50] sm:$0xff]
    %v33 = vld [vmem:[%s1 + $0x58] sm:$0xff]
    %v34 = vld [vmem:[%s1 + $0x60] sm:$0xff]
    %v35 = vld [vmem:[%s1 + $0x68] sm:$0xff]
    %v36 = vld [vmem:[%s1 + $0x70] sm:$0xff]
    %v37 = vld [vmem:[%s1 + $0x78] sm:$0xff]
    %v38 = vld [vmem:[%s1 + $0x80] sm:$0xff]
    %v39 = vld [vmem:[%s1 + $0x88] sm:$0xff]
    %v40 = vld [vmem:[%s1 + $0x90] sm:$0xff]
    %v41 = vld [vmem:[%s1 + $0x98] sm:$0xff]
    %v42 = vld [vmem:[%s1 + $0xa0] sm:$0xff]
    %v43 = vld [vmem:[%s1 + $0xa8] sm:$0xff]
    %v44 = vld [vmem:[%s1 + $0xb0] sm:$0xff]
    %v45 = vld [vmem:[%s1 + $0xb8] sm:$0xff]
    %v46 = vld [vmem:[%s1 + $0xc0] sm:$0xff]
    %v47 = vld [vmem:[%s1 + $0xc8] sm:$0xff]
    %v48 = vld [vmem:[%s1 + $0xd0] sm:$0xff]
    %v49 = vld [vmem:[%s1 + $0xd8] sm:$0xff]
    %v50 = vld [vmem:[%s1 + $0xe0] sm:$0xff]
    %v51 = vld [vmem:[%s1 + $0xe8] sm:$0xff]
    %v52 = vld [vmem:[%s1 + $0xf0] sm:$0xff]
    %v53 = vld [vmem:[%s1 + $0xf8] sm:$0xff]
    %v54 = vld [vmem:[%s1 + $0x100] sm:$0xff]
    %v55 = vld [vmem:[%s1 + $0x108] sm:$0xff]
    %v56 = vld [vmem:[%s1 + $0x110] sm:$0xff]
    %v57 = vld [vmem:[%s1 + $0x118] sm:$0xff]
    %v58 = vld [vmem:[%s1 + $0x120] sm:$0xff]
    %v59 = vld [vmem:[%s1 + $0x128] sm:$0xff]
    %v60 = vld [vmem:[%s1 + $0x130] sm:$0xff]
    %v61 = vld [vmem:[%s1 + $0x138] sm:$0xff]
    %v62 = vld [vmem:[%s1 + $0x140] sm:$0xff]
    %v63 = vld [vmem:[%s1 + $0x148] sm:$0xff]
    %v64 = vld [vmem:[%s1 + $0x150] sm:$0xff]
    %v65 = vld [vmem:[%s1 + $0x158] sm:$0xff]
    %v66 = vld [vmem:[%s1 + $0x160] sm:$0xff]
    %v67 = vld [vmem:[%s1 + $0x168] sm:$0xff]
    %v68 = vld [vmem:[%s1 + $0x170] sm:$0xff]
    %v69 = vld [vmem:[%s1 + $0x178] sm:$0xff]
    %v70 = vld [vmem:[%s1 + $0x180] sm:$0xff]
    %v71 = vld [vmem:[%s1 + $0x188] sm:$0xff]
    %v72 = vld [vmem:[%s1 + $0x190] sm:$0xff]
    %v73 = vld [vmem:[%s1 + $0x198] sm:$0xff]
    %v74 = vld [vmem:[%s1 + $0x1a0] sm:$0xff]
    %v75 = vld [vmem:[%s1 + $0x1a8] sm:$0xff]
    %v76 = vld [vmem:[%s1 + $0x1b0] sm:$0xff]
    %v77 = vld [vmem:[%s1 + $0x1b8] sm:$0xff]
    %v78 = vld [vmem:[%s1 + $0x1c0] sm:$0xff]
    %v79 = vld [vmem:[%s1 + $0x1c8] sm:$0xff]
    %v80 = vld [vmem:[%s1 + $0x1d0] sm:$0xff]
    %v81 = vld [vmem:[%s1 + $0x1d8] sm:$0xff]
    %v82 = vld [vmem:[%s1 + $0x1e0] sm:$0xff]
    %v83 = vld [vmem:[%s1 + $0x1e8] sm:$0xff]
    %v84 = vld [vmem:[%s1 + $0x1f0] sm:$0xff]
    %v85 = vld [vmem:[%s1 + $0x1f8] sm:$0xff]
    %v86 = vld [vmem:[%s2] sm:$0x1]
    %v88 = vlaneseq
    %v89 = vshrl.u32 %v88, 7
    %v90 = vsub.s32 0, %v89
    %v91 = vrot.slane %v86, %v90
    %v101 = vcombine.low %v14, %v15
    %v102 = vcombine.low %v16, %v17
    %v103 = vcombine.low %v18, %v19
    %v104 = vcombine.low %v20, %v21
    %v106 = vunpack.c.l.s4 1966171168
    %v107 = vunpack.c.0.s8 %v106
    %v108 = vlaneseq
    %v109 = vshrl.u32 %v108, 7
    %v110 = vsub.s32 %v107, %v109
    %v111 = vrot.slane %v101, %v110
    %v113 = vunpack.c.l.s4 1966171168
    %v114 = vunpack.c.0.s8 %v113
    %v115 = vlaneseq
    %v116 = vshrl.u32 %v115, 7
    %v117 = vsub.s32 %v114, %v116
    %v118 = vrot.slane %v102, %v117
    %v120 = vunpack.c.l.s4 1966171168
    %v121 = vunpack.c.0.s8 %v120
    %v122 = vlaneseq
    %v123 = vshrl.u32 %v122, 7
    %v124 = vsub.s32 %v121, %v123
    %v125 = vrot.slane %v103, %v124
    %v127 = vunpack.c.l.s4 1966171168
    %v128 = vunpack.c.0.s8 %v127
    %v129 = vlaneseq
    %v130 = vshrl.u32 %v129, 7
    %v131 = vsub.s32 %v128, %v130
    %v132 = vrot.slane %v104, %v131
    %v133 = vcombine.low %v111, %v118
    %v134 = vcombine.high %v111, %v118
    %v135 = vcombine.low %v125, %v132
    %v136 = vcombine.high %v125, %v132
    %v138 = vunpack.c.l.s4 1966171168
    %v139 = vunpack.c.0.s8 %v138
    %v140 = vlaneseq
    %v141 = vshrl.u32 %v140, 7
    %v142 = vsub.s32 %v139, %v141
    %v143 = vrot.slane %v133, %v142
    %v145 = vunpack.c.l.s4 1966171168
    %v146 = vunpack.c.0.s8 %v145
    %v147 = vlaneseq
    %v148 = vshrl.u32 %v147, 7
    %v149 = vsub.s32 %v146, %v148
    %v150 = vrot.slane %v134, %v149
    %v152 = vunpack.c.l.s4 1966171168
    %v153 = vunpack.c.0.s8 %v152
    %v154 = vlaneseq
    %v155 = vshrl.u32 %v154, 7
    %v156 = vsub.s32 %v153, %v155
    %v157 = vrot.slane %v135, %v156
    %v159 = vunpack.c.l.s4 1966171168
    %v160 = vunpack.c.0.s8 %v159
    %v161 = vlaneseq
    %v162 = vshrl.u32 %v161, 7
    %v163 = vsub.s32 %v160, %v162
    %v164 = vrot.slane %v136, %v163
    %v165 = vcombine.low %v143, %v157
    %v166 = vcombine.high %v143, %v157
    %v167 = vcombine.low %v150, %v164
    %v168 = vcombine.high %v150, %v164
    %173 = vmatprep.subr.mxu0 0.0
    %174 = vmatpush1.msra.mxu0 %v22
    %175 = vmatprep.subr.mxu0 0.0
    %176 = vmatpush1.msra.mxu0 %v23
    %177 = vmatprep.subr.mxu0 0.0
    %178 = vmatpush1.msra.mxu0 %v24
    %179 = vmatprep.subr.mxu0 0.0
    %180 = vmatpush1.msra.mxu0 %v25
    %181 = vmatprep.subr.mxu0 0.0
    %182 = vmatpush1.msra.mxu0 %v26
    %183 = vmatprep.subr.mxu0 0.0
    %184 = vmatpush1.msra.mxu0 %v27
    %185 = vmatprep.subr.mxu0 0.0
    %186 = vmatpush1.msra.mxu0 %v28
    %187 = vmatprep.subr.mxu0 0.0
    %188 = vmatpush1.msra.mxu0 %v29
    %189 = vmatprep.subr.mxu0 0.0
    %190 = vmatpush1.msra.mxu0 %v30
    %191 = vmatprep.subr.mxu0 0.0
    %192 = vmatpush1.msra.mxu0 %v31
    %193 = vmatprep.subr.mxu0 0.0
    %194 = vmatpush1.msra.mxu0 %v32
    %195 = vmatprep.subr.mxu0 0.0
    %196 = vmatpush1.msra.mxu0 %v33
    %197 = vmatprep.subr.mxu0 0.0
    %198 = vmatpush1.msra.mxu0 %v34
    %199 = vmatprep.subr.mxu0 0.0
    %200 = vmatpush1.msra.mxu0 %v35
    %201 = vmatprep.subr.mxu0 0.0
    %202 = vmatpush1.msra.mxu0 %v36
    %203 = vmatprep.subr.mxu0 0.0
    %204 = vmatpush1.msra.mxu0 %v37
    %205 = vmatprep.subr.mxu0 0.0
    %206 = vmatpush1.msra.mxu0 %v38
    %207 = vmatprep.subr.mxu0 0.0
    %208 = vmatpush1.msra.mxu0 %v39
    %209 = vmatprep.subr.mxu0 0.0
    %210 = vmatpush1.msra.mxu0 %v40
    %211 = vmatprep.subr.mxu0 0.0
    %212 = vmatpush1.msra.mxu0 %v41
    %213 = vmatprep.subr.mxu0 0.0
    %214 = vmatpush1.msra.mxu0 %v42
    %215 = vmatprep.subr.mxu0 0.0
    %216 = vmatpush1.msra.mxu0 %v43
    %217 = vmatprep.subr.mxu0 0.0
    %218 = vmatpush1.msra.mxu0 %v44
    %219 = vmatprep.subr.mxu0 0.0
    %220 = vmatpush1.msra.mxu0 %v45
    %221 = vmatprep.subr.mxu0 0.0
    %222 = vmatpush1.msra.mxu0 %v46
    %223 = vmatprep.subr.mxu0 0.0
    %224 = vmatpush1.msra.mxu0 %v47
    %225 = vmatprep.subr.mxu0 0.0
    %226 = vmatpush1.msra.mxu0 %v48
    %227 = vmatprep.subr.mxu0 0.0
    %228 = vmatpush1.msra.mxu0 %v49
    %229 = vmatprep.subr.mxu0 0.0
    %230 = vmatpush1.msra.mxu0 %v50
    %231 = vmatprep.subr.mxu0 0.0
    %232 = vmatpush1.msra.mxu0 %v51
    %233 = vmatprep.subr.mxu0 0.0
    %234 = vmatpush1.msra.mxu0 %v52
    %235 = vmatprep.subr.mxu0 0.0
    %236 = vmatpush1.msra.mxu0 %v53
    %237 = vmatprep.mubr.f32.mxu0 %v167
    %238 = vmatmul.mubr.f32.gmra.mrb[0].mxu0 %v165
    %v239 = vpop.f32.mrb[0].mxu0
    %v240 = vadd.f32 %v91, %v239
    %v241 = vpop.f32.mrb[0].mxu0
    %242 = vdwg.mxu0
    %243 = vmatprep.subr.mxu0 0.0
    %244 = vmatpush1.msra.mxu0 %v54
    %245 = vmatprep.subr.mxu0 0.0
    %246 = vmatpush1.msra.mxu0 %v55
    %247 = vmatprep.subr.mxu0 0.0
    %248 = vmatpush1.msra.mxu0 %v56
    %249 = vmatprep.subr.mxu0 0.0
    %250 = vmatpush1.msra.mxu0 %v57
    %251 = vmatprep.subr.mxu0 0.0
    %252 = vmatpush1.msra.mxu0 %v58
    %253 = vmatprep.subr.mxu0 0.0
    %254 = vmatpush1.msra.mxu0 %v59
    %255 = vmatprep.subr.mxu0 0.0
    %256 = vmatpush1.msra.mxu0 %v60
    %257 = vmatprep.subr.mxu0 0.0
    %258 = vmatpush1.msra.mxu0 %v61
    %259 = vmatprep.subr.mxu0 0.0
    %260 = vmatpush1.msra.mxu0 %v62
    %261 = vmatprep.subr.mxu0 0.0
    %262 = vmatpush1.msra.mxu0 %v63
    %263 = vmatprep.subr.mxu0 0.0
    %264 = vmatpush1.msra.mxu0 %v64
    %265 = vmatprep.subr.mxu0 0.0
    %266 = vmatpush1.msra.mxu0 %v65
    %267 = vmatprep.subr.mxu0 0.0
    %268 = vmatpush1.msra.mxu0 %v66
    %269 = vmatprep.subr.mxu0 0.0
    %270 = vmatpush1.msra.mxu0 %v67
    %271 = vmatprep.subr.mxu0 0.0
    %272 = vmatpush1.msra.mxu0 %v68
    %273 = vmatprep.subr.mxu0 0.0
    %274 = vmatpush1.msra.mxu0 %v69
    %275 = vmatprep.subr.mxu0 0.0
    %276 = vmatpush1.msra.mxu0 %v70
    %277 = vmatprep.subr.mxu0 0.0
    %278 = vmatpush1.msra.mxu0 %v71
    %279 = vmatprep.subr.mxu0 0.0
    %280 = vmatpush1.msra.mxu0 %v72
    %281 = vmatprep.subr.mxu0 0.0
    %282 = vmatpush1.msra.mxu0 %v73
    %283 = vmatprep.subr.mxu0 0.0
    %284 = vmatpush1.msra.mxu0 %v74
    %285 = vmatprep.subr.mxu0 0.0
    %286 = vmatpush1.msra.mxu0 %v75
    %287 = vmatprep.subr.mxu0 0.0
    %288 = vmatpush1.msra.mxu0 %v76
    %289 = vmatprep.subr.mxu0 0.0
    %290 = vmatpush1.msra.mxu0 %v77
    %291 = vmatprep.subr.mxu0 0.0
    %292 = vmatpush1.msra.mxu0 %v78
    %293 = vmatprep.subr.mxu0 0.0
    %294 = vmatpush1.msra.mxu0 %v79
    %295 = vmatprep.subr.mxu0 0.0
    %296 = vmatpush1.msra.mxu0 %v80
    %297 = vmatprep.subr.mxu0 0.0
    %298 = vmatpush1.msra.mxu0 %v81
    %299 = vmatprep.subr.mxu0 0.0
    %300 = vmatpush1.msra.mxu0 %v82
    %301 = vmatprep.subr.mxu0 0.0
    %302 = vmatpush1.msra.mxu0 %v83
    %303 = vmatprep.subr.mxu0 0.0
    %304 = vmatpush1.msra.mxu0 %v84
    %305 = vmatprep.subr.mxu0 0.0
    %306 = vmatpush1.msra.mxu0 %v85
    %307 = vmatprep.mubr.f32.mxu0 %v168
    %308 = vmatmul.mubr.f32.gmra.mrb[0].mxu0 %v166
    %v309 = vpop.f32.mrb[0].mxu0
    %v310 = vadd.f32 %v240, %v309
    %v311 = vpop.f32.mrb[0].mxu0
    %312 = vdwg.mxu0
    %vm313 = vcmask 130048
    %314 = vst.msk [vmem:[#allocation2] sm:$0xff] %vm313, %v310
    // Predicated region
    $region14: #{node_feature_to_scalar.1} parent=1 // pred_check
      _
    $region15: #{node_feature_to_scalar.1} parent=1 // pred_check_branch
      %316 = sbr.rel (0) target = $region17
    $region16: #{node_feature_to_scalar.1} parent=1 // pred_region
      // Predicated region
      $region18: #{node_feature_to_scalar.1} parent=16 // pred_check
        _
      $region19: #{node_feature_to_scalar.1} parent=16 // pred_check_branch
        %318 = sbr.rel (0) target = $region21
      $region20: #{node_feature_to_scalar.1} parent=16 // pred_region
        // Predicated region
        $region22: #{node_feature_to_scalar.1} parent=20 // pred_check
          _
        $region23: #{node_feature_to_scalar.1} parent=20 // pred_check_branch
          %320 = sbr.rel target = $region25
        $region24: #{node_feature_to_scalar.1} parent=20 // pred_region
          // Predicated region
          $region37: #{node_feature_to_scalar.1} parent=24 // pred_check
            _
          $region38: #{node_feature_to_scalar.1} parent=24 // pred_check_branch
            %335 = sbr.rel (0) target = $region40
          $region39: #{node_feature_to_scalar.1} parent=24 // pred_region
            loop: start=0, step=1, limit=1
            $region41: #{node_feature_to_scalar.1} parent=39 // loop_pre_header
              _
            $region42: #{node_feature_to_scalar.1} parent=39 // loop_header
              %s338 = sphi 0, %s342
              %p339 = scmp.ge.s32.totalorder %s338, 1
              %s343 = sphi [#allocation2], [#allocation2]
              %s344 = sphi %s3, %s3
            $region43: #{node_feature_to_scalar.1} parent=39 // loop_header_branch
              %341 = sbr.rel (%p339) target = $region47
            $region44: #{node_feature_to_scalar.1} parent=39 // loop_body
              %v345 = vld [vmem:[%s343] sm:$0x1]
              %346 = vst [vmem:[%s344] sm:$0x1] %v345
            $region45: #{node_feature_to_scalar.1} parent=39 // loop_footer
              %s342 = sadd.s32 1, %s338
            $region46: #{node_feature_to_scalar.1} parent=39 // loop_footer_branch
              %337 = sbr.rel target = $region42
            $region47: #{node_feature_to_scalar.1} parent=39 // loop_exit
              _
          $region40: #{node_feature_to_scalar.1} parent=24 // pred_fallthru
            _
        $region25: #{node_feature_to_scalar.1} parent=20 // pred_fallthru
          _
        // Predicated region
        $region26: #{node_feature_to_scalar.1} parent=20 // pred_check
          _
        $region27: #{node_feature_to_scalar.1} parent=20 // pred_check_branch
          %322 = sbr.rel (0) target = $region29
        $region28: #{node_feature_to_scalar.1} parent=20 // pred_region
          loop: start=0, step=1, limit=1
          $region30: #{node_feature_to_scalar.1} parent=28 // loop_pre_header
            _
          $region31: #{node_feature_to_scalar.1} parent=28 // loop_header
            %s325 = sphi 0, %s329
            %p326 = scmp.ge.s32.totalorder %s325, 1
            %s330 = sphi [#allocation2], [#allocation2]
            %s331 = sphi %s3, %s3
          $region32: #{node_feature_to_scalar.1} parent=28 // loop_header_branch
            %328 = sbr.rel (%p326) target = $region36
          $region33: #{node_feature_to_scalar.1} parent=28 // loop_body
            %v332 = vld [vmem:[%s330] sm:$0x1]
            %333 = vst [vmem:[%s331] sm:$0x1] %v332
          $region34: #{node_feature_to_scalar.1} parent=28 // loop_footer
            %s329 = sadd.s32 1, %s325
          $region35: #{node_feature_to_scalar.1} parent=28 // loop_footer_branch
            %324 = sbr.rel target = $region31
          $region36: #{node_feature_to_scalar.1} parent=28 // loop_exit
            _
        $region29: #{node_feature_to_scalar.1} parent=20 // pred_fallthru
          _
      $region21: #{node_feature_to_scalar.1} parent=16 // pred_fallthru
        _
      %347 = vnop
    $region17: #{node_feature_to_scalar.1} parent=1 // pred_fallthru
      _
    // Predicated region
    $region48: #{node_feature_to_scalar.1} parent=1 // pred_check
      _
    $region49: #{node_feature_to_scalar.1} parent=1 // pred_check_branch
      %349 = sbr.rel (0) target = $region51
    $region50: #{node_feature_to_scalar.1} parent=1 // pred_region
      _
    $region51: #{node_feature_to_scalar.1} parent=1 // pred_fallthru
      _

</llo_original>
